<compile_context>
chip_gen: v7x
topology: tpu7x:2x2x1
jax: 0.10.0
libtpu: 0.0.40
codegen_flags: <defaults>
</compile_context>

<pallas_src>
import jax
import jax.numpy as jnp
from jax.experimental import pallas as pl
from jax.experimental.pallas import tpu as pltpu

_MASK_VALUE = -1e30   # finite stand-in for -inf (avoids NaN on all-pad rows)


def _attn_kernel(tokens_ref, mask_ref, w_ref, b_ref, out_ref):
    x = tokens_ref[...]          # (TB, S, D) f32, VMEM
    w = w_ref[...]               # (1, D)     f32, VMEM (resident across steps)
    bias = b_ref[0]              # scalar     f32, SMEM

    # Linear(D, 1): scores[b, s] = sum_d x[b, s, d] * w[0, d] + bias
    scores = jnp.sum(x * w[None, :, :], axis=-1) + bias            # (TB, S)

    # masked_fill_(mask == 1, -inf) with a finite fill value
    masked = jnp.where(mask_ref[...] != 0, jnp.float32(_MASK_VALUE), scores)

    # numerically stable softmax along the sequence (lane) axis
    m = jnp.max(masked, axis=-1, keepdims=True)                    # (TB, 1)
    e = jnp.exp(masked - m)                                        # (TB, S)
    denom = jnp.sum(e, axis=-1, keepdims=True)                     # (TB, 1)
    out_ref[...] = e * pl.reciprocal(denom, approx=False)          # (TB, S)


def _pick_batch_tile(B, S, D, itemsize=4, target_tile_bytes=4 << 20):
    """Largest batch tile TB that divides B, satisfies the sublane rule for the
    (TB, S) mask/alpha blocks (TB % 8 == 0 unless TB == B), and keeps the
    lane-padded tokens tile near `target_tile_bytes` so ~3 copies
    (double-buffered input + product temp) fit even v5e's 16 MiB scoped VMEM."""
    padded_d = pl.cdiv(D, 128) * 128          # D sits on lanes -> lane-padded in VMEM
    per_row = max(1, S * padded_d * itemsize)
    target = max(1, min(B, target_tile_bytes // per_row))
    for tb in range(target, 0, -1):
        if B % tb == 0 and (tb % 8 == 0 or tb == B):
            return tb
    return B


def dot_product_self_attention(tokens, tokens_mask, weight, bias, *, batch_tile=None):
    """tokens: (B,S,D) f32; tokens_mask: (B,S) {0,1} (1 = padding);
    weight: (1,D) f32 (nn.Linear(D,1).weight); bias: (1,) f32."""
    B, S, D = tokens.shape
    tokens = tokens.astype(jnp.float32)
    tokens_mask = tokens_mask.astype(jnp.int32)
    weight = jnp.asarray(weight, jnp.float32).reshape(1, D)
    bias = jnp.asarray(bias, jnp.float32).reshape(1)

    tb = batch_tile if batch_tile is not None else _pick_batch_tile(B, S, D)
    if B % tb != 0 or not (tb % 8 == 0 or tb == B):
        raise ValueError(f"invalid batch_tile={tb} for B={B}")

    grid = (B // tb,)
    return pl.pallas_call(
        _attn_kernel,
        out_shape=jax.ShapeDtypeStruct((B, S), jnp.float32),
        grid=grid,
        in_specs=[
            pl.BlockSpec((tb, S, D), lambda i: (i, 0, 0)),        # tokens tile
            pl.BlockSpec((tb, S), lambda i: (i, 0)),              # mask tile
            pl.BlockSpec((1, D), lambda i: (0, 0)),               # weight (resident)
            pl.BlockSpec(memory_space=pltpu.MemorySpace.SMEM),    # bias scalar
        ],
        out_specs=pl.BlockSpec((tb, S), lambda i: (i, 0)),
        compiler_params=pltpu.CompilerParams(
            dimension_semantics=("parallel",)),                   # v7x megacore
    )(tokens, tokens_mask, weight, bias)


def _reference(tokens, tokens_mask, weight, bias):
    scores = jnp.einsum("bsd,d->bs", tokens, weight[0]) + bias[0]
    scores = jnp.where(tokens_mask != 0, -jnp.inf, scores)
    return jax.nn.softmax(scores, axis=-1)


if __name__ == "__main__":
    # Small but non-trivial shapes: enough batch to exercise a real 2-step grid.
    B, S, D = 16, 64, 32       # Config.input_dim = 32

    key = jax.random.PRNGKey(0)
    k_tok, k_w, k_b, k_len = jax.random.split(key, 4)

    tokens = jax.random.normal(k_tok, (B, S, D), dtype=jnp.float32)
    # variable-length sequences: positions >= length are padding (mask == 1)
    lengths = jax.random.randint(k_len, (B,), minval=1, maxval=S + 1)
    tokens_mask = (jnp.arange(S)[None, :] >= lengths[:, None]).astype(jnp.int32)

    # nn.Linear(D, 1) default init: U(-1/sqrt(D), 1/sqrt(D))
    bound = 1.0 / (D ** 0.5)
    weight = jax.random.uniform(k_w, (1, D), minval=-bound, maxval=bound,
                                dtype=jnp.float32)
    bias = jax.random.uniform(k_b, (1,), minval=-bound, maxval=bound,
                              dtype=jnp.float32)

    # batch_tile=8 -> grid=(2,): double-buffered batch tiles, "parallel" axis.
    alpha = dot_product_self_attention(tokens, tokens_mask, weight, bias,
                                       batch_tile=8)
    alpha = jax.block_until_ready(alpha)
    ref = _reference(tokens, tokens_mask, weight, bias)

    assert alpha.shape == (B, S)
    assert bool(jnp.all(jnp.isfinite(alpha)))
    assert jnp.allclose(alpha, ref, atol=1e-5, rtol=1e-5), "mismatch vs reference"

    # Also exercise the auto-tiled (single-step) path at the module's tiny shapes.
    alpha2 = dot_product_self_attention(tokens[:2, :8], tokens_mask[:2, :8],
                                        weight, bias)
    alpha2 = jax.block_until_ready(alpha2)
    ref2 = _reference(tokens[:2, :8], tokens_mask[:2, :8], weight, bias)
    assert jnp.allclose(alpha2, ref2, atol=1e-5, rtol=1e-5), "mismatch (small)"

    print("KERNEL_OK")
</pallas_src>

<mosaic_0001>
module attributes {stable_mosaic.version = 11 : i64} {
  func.func @_attn_kernel(%arg0: i32, %arg1: memref<8x64x32xf32, #tpu.memory_space<vmem>>, %arg2: memref<8x64xi32, #tpu.memory_space<vmem>>, %arg3: memref<1x32xf32, #tpu.memory_space<vmem>>, %arg4: memref<1xf32, #tpu.memory_space<smem>>, %arg5: memref<8x64xf32, #tpu.memory_space<vmem>>) attributes {dimension_semantics = [#tpu.dimension_semantics<parallel>], iteration_bounds = array<i64: 2>, scalar_prefetch = 0 : i64, scratch_operands = 0 : i64, tpu.core_type = #tpu.core_type<tc>, window_params = [{transform_indices = @transform_0, window_bounds = array<i64: 8, 64, 32>}, {transform_indices = @transform_1, window_bounds = array<i64: 8, 64>}, {pipeline_mode = #tpu.pipeline_mode<synchronous>, transform_indices = @transform_2, window_bounds = array<i64: 1, 32>}, {transform_indices = @transform_3, window_bounds = array<i64: 1>}, {transform_indices = @transform_4, window_bounds = array<i64: 8, 64>}]} {
    %c0 = arith.constant 0 : index
    %c0_0 = arith.constant 0 : index
    %c0_1 = arith.constant 0 : index
    %0 = vector.load %arg1[%c0, %c0_0, %c0_1] : memref<8x64x32xf32, #tpu.memory_space<vmem>>, vector<8x64x32xf32>
    %c0_2 = arith.constant 0 : index
    %c0_3 = arith.constant 0 : index
    %1 = vector.load %arg3[%c0_2, %c0_3] : memref<1x32xf32, #tpu.memory_space<vmem>>, vector<1x32xf32>
    %c0_4 = arith.constant 0 : index
    %2 = memref.load %arg4[%c0_4] : memref<1xf32, #tpu.memory_space<smem>>
    %3 = vector.shape_cast %1 : vector<1x32xf32> to vector<1x1x32xf32>
    %4 = vector.broadcast %3 : vector<1x1x32xf32> to vector<8x64x32xf32>
    %5 = arith.mulf %0, %4 : vector<8x64x32xf32>
    %cst = arith.constant dense<0.000000e+00> : vector<8x64xf32>
    %6 = vector.multi_reduction <add>, %5, %cst [2] : vector<8x64x32xf32> to vector<8x64xf32>
    %7 = vector.broadcast %2 : f32 to vector<8x64xf32>
    %8 = arith.addf %6, %7 : vector<8x64xf32>
    %c0_5 = arith.constant 0 : index
    %c0_6 = arith.constant 0 : index
    %9 = vector.load %arg2[%c0_5, %c0_6] : memref<8x64xi32, #tpu.memory_space<vmem>>, vector<8x64xi32>
    %c0_i32 = arith.constant 0 : i32
    %10 = vector.broadcast %c0_i32 : i32 to vector<8x64xi32>
    %11 = arith.cmpi ne, %9, %10 : vector<8x64xi32>
    %cst_7 = arith.constant -1.000000e+30 : f32
    %12 = vector.broadcast %cst_7 : f32 to vector<8x64xf32>
    %13 = arith.select %11, %12, %8 : vector<8x64xi1>, vector<8x64xf32>
    %cst_8 = arith.constant dense<0xFF800000> : vector<8xf32>
    %14 = vector.multi_reduction <maximumf>, %13, %cst_8 [1] : vector<8x64xf32> to vector<8xf32>
    %15 = vector.shape_cast %14 : vector<8xf32> to vector<8x1xf32>
    %16 = vector.broadcast %15 : vector<8x1xf32> to vector<8x64xf32>
    %17 = arith.subf %13, %16 : vector<8x64xf32>
    %18 = math.exp %17 : vector<8x64xf32>
    %cst_9 = arith.constant dense<0.000000e+00> : vector<8xf32>
    %19 = vector.multi_reduction <add>, %18, %cst_9 [1] : vector<8x64xf32> to vector<8xf32>
    %20 = vector.shape_cast %19 : vector<8xf32> to vector<8x1xf32>
    %21 = tpu.reciprocal %20 : vector<8x1xf32> -> vector<8x1xf32>
    %22 = vector.broadcast %21 : vector<8x1xf32> to vector<8x64xf32>
    %23 = arith.mulf %18, %22 : vector<8x64xf32>
    %c0_10 = arith.constant 0 : index
    %c0_11 = arith.constant 0 : index
    %24 = vector.load %arg5[%c0_10, %c0_11] : memref<8x64xf32, #tpu.memory_space<vmem>>, vector<8x64xf32>
    tpu.vector_store %arg5[%c0_10, %c0_11], %23 {strides = array<i32>} : memref<8x64xf32, #tpu.memory_space<vmem>>, vector<8x64xf32>,
    return
  }
  func.func @transform_0(%arg0: i32) -> (i32, i32, i32) {
    %c0_i32 = arith.constant 0 : i32
    %c0_i32_0 = arith.constant 0 : i32
    %c0_i32_1 = arith.constant 0 : i32
    return %arg0, %c0_i32, %c0_i32_0 : i32, i32, i32
  }
  func.func @transform_1(%arg0: i32) -> (i32, i32) {
    %c0_i32 = arith.constant 0 : i32
    %c0_i32_0 = arith.constant 0 : i32
    return %arg0, %c0_i32 : i32, i32
  }
  func.func @transform_2(%arg0: i32) -> (i32, i32) {
    %c0_i32 = arith.constant 0 : i32
    %c0_i32_0 = arith.constant 0 : i32
    %c0_i32_1 = arith.constant 0 : i32
    return %c0_i32, %c0_i32_0 : i32, i32
  }
  func.func @transform_3(%arg0: i32) -> i32 {
    %c0_i32 = arith.constant 0 : i32
    %c0_i32_0 = arith.constant 0 : i32
    return %c0_i32 : i32
  }
  func.func @transform_4(%arg0: i32) -> (i32, i32) {
    %c0_i32 = arith.constant 0 : i32
    %c0_i32_0 = arith.constant 0 : i32
    return %arg0, %c0_i32 : i32, i32
  }
}

</mosaic_0001>

<llo_original>
// kernel: tpu_custom_call.1
$region0: #{tpu_custom_call.1}
  #allocation0 [shape = 'u32[]', space=smem, size = 0x4, offset = 0x4, fixed_abs, tag = 'smem constant byte address 0x4 - core index']
  #allocation1 [shape = 'u32[144,128]{1,0:T(1,128)}', space=vmem, size = 0x12000, scoped, tag = 'internal scratch']
  #allocation2 [shape = 'f32[1]{0:T(128)S(6)}', space=smem, size = 0x200, scoped, tag = 'scoped memory for tpu_custom_call.1']
  %s0 = inlined_call_operand.vmem [shape: f32[16,64,32], index: 0, kind: input, shape index: {}]
  %s1 = inlined_call_operand.vmem [shape: s32[16,64], index: 1, kind: input, shape index: {}]
  %s2 = inlined_call_operand.vmem [shape: f32[1,32], index: 2, kind: input, shape index: {}]
  %s3 = inlined_call_operand.<no memory space> [shape: f32[1], index: 3, kind: input, shape index: {}]
  %s4 = inlined_call_operand.hbm [shape: f32[16,64], index: 4, kind: output, shape index: {}]
  %s5 = sld [smem:[#allocation0]]
  $region49: #{tpu_custom_call.1} parent=0
    _
  %s7 = ssub.s32 1, %s5
  %s8 = scalar_select 0, %s7, %s5
  %9 = sst [smem:[#allocation2]] %s3
  $region1: #{tpu_custom_call.1} parent=0
    #allocation3 [shape = 'u8[8192]{0}', space=vmem, size = 0x2000, scoped, tag = 'output window, operand 0']
    #allocation4 [shape = 's32[2]{0}', space=sflag, size = 0x8, scoped, tag = 'scoped memory for tpu_custom_call.1']
    %10 = vsyncpa [#allocation4], 0
    %s11 = scalar_lea.sflag [#allocation4], 1
    %12 = vsyncpa %s11, 0
    loop: start=0, step=1, limit=4
    $region2: #{tpu_custom_call.1} parent=1 // loop_pre_header
      _
    $region3: #{tpu_custom_call.1} parent=1 // loop_header
      %s14 = sphi 0, %s18
      %p15 = scmp.ge.s32.totalorder %s14, 4
      %s24 = sphi 0, %s26
      %s27 = sphi 0, %s24
      %s28 = sphi 0, %s27
      %s44 = sphi 0, %s28
      %s50 = sphi 0, %s52
      %s53 = sphi 0, %s50
      %s54 = sphi 0, %s53
      %s70 = sphi 0, %s54
      %s74 = sphi 0, %s74
      %s76 = sphi 0, %s74
      %s77 = sphi 0, %s76
      %s91 = sphi 0, %s77
      %s95 = sphi 0, %s95
      %s97 = sphi 0, %s95
      %s98 = sphi 0, %s97
      %s112 = sphi 0, %s98
      %s118 = sphi 0, %s120
      %s121 = sphi 0, %s118
      %s122 = sphi 0, %s121
      %s138 = sphi 0, %s122
    $region4: #{tpu_custom_call.1} parent=1 // loop_header_branch
      %17 = sbr.rel (%p15) target = $region8
    $region5: #{tpu_custom_call.1} parent=1 // loop_body
      %s19 = ssub.s32 %s14, 1
      %s20 = ssub.s32 %s14, 2
      %s21 = sadd.s32 %s14, 1
      %s22 = ssub.s32 %s14, %s21
      %p23 = scmp.eq.s32.totalorder %s22, 0
      %s25 = sadd.s32 %s24, 1
      %s26 = scalar_select %p23, %s24, %s25
      %p29 = pneg %p23
      %p30 = scmp.eq.s32.totalorder %s14, 1
      %p31 = por %p29, %p30
      %p32 = scmp.ne.s32.totalorder %s24, %s27
      %p33 = scmp.eq.s32.totalorder %s14, 0
      %p34 = por %p32, %p33
      %p35 = scmp.ne.s32.totalorder %s24, %s27
      %p36 = scmp.eq.s32.totalorder %s19, 1
      %p37 = por %p35, %p36
      %p38 = scmp.ne.s32.totalorder %s27, %s28
      %p39 = scmp.eq.s32.totalorder %s19, 0
      %p40 = por %p38, %p39
      %p41 = scmp.ne.s32.totalorder %s27, %s28
      %p42 = scmp.eq.s32.totalorder %s20, 1
      %p43 = por %p41, %p42
      %p45 = scmp.ne.s32.totalorder %s28, %s44
      %p46 = scmp.eq.s32.totalorder %s20, 0
      %p47 = por %p45, %p46
      %s48 = ssub.s32 %s14, %s21
      %p49 = scmp.eq.s32.totalorder %s48, 0
      %s51 = sadd.s32 %s50, 1
      %s52 = scalar_select %p49, %s50, %s51
      %p55 = pneg %p49
      %p56 = scmp.eq.s32.totalorder %s14, 1
      %p57 = por %p55, %p56
      %p58 = scmp.ne.s32.totalorder %s50, %s53
      %p59 = scmp.eq.s32.totalorder %s14, 0
      %p60 = por %p58, %p59
      %p61 = scmp.ne.s32.totalorder %s50, %s53
      %p62 = scmp.eq.s32.totalorder %s19, 1
      %p63 = por %p61, %p62
      %p64 = scmp.ne.s32.totalorder %s53, %s54
      %p65 = scmp.eq.s32.totalorder %s19, 0
      %p66 = por %p64, %p65
      %p67 = scmp.ne.s32.totalorder %s53, %s54
      %p68 = scmp.eq.s32.totalorder %s20, 1
      %p69 = por %p67, %p68
      %p71 = scmp.ne.s32.totalorder %s54, %s70
      %p72 = scmp.eq.s32.totalorder %s20, 0
      %p73 = por %p71, %p72
      %s75 = sadd.s32 %s74, 1
      %p78 = scmp.eq.s32.totalorder %s14, 1
      %p79 = scmp.ne.s32.totalorder %s74, %s76
      %p80 = scmp.eq.s32.totalorder %s14, 0
      %p81 = por %p79, %p80
      %p82 = scmp.ne.s32.totalorder %s74, %s76
      %p83 = scmp.eq.s32.totalorder %s19, 1
      %p84 = por %p82, %p83
      %p85 = scmp.ne.s32.totalorder %s76, %s77
      %p86 = scmp.eq.s32.totalorder %s19, 0
      %p87 = por %p85, %p86
      %p88 = scmp.ne.s32.totalorder %s76, %s77
      %p89 = scmp.eq.s32.totalorder %s20, 1
      %p90 = por %p88, %p89
      %p92 = scmp.ne.s32.totalorder %s77, %s91
      %p93 = scmp.eq.s32.totalorder %s20, 0
      %p94 = por %p92, %p93
      %s96 = sadd.s32 %s95, 1
      %p99 = scmp.eq.s32.totalorder %s14, 1
      %p100 = scmp.ne.s32.totalorder %s95, %s97
      %p101 = scmp.eq.s32.totalorder %s14, 0
      %p102 = por %p100, %p101
      %p103 = scmp.ne.s32.totalorder %s95, %s97
      %p104 = scmp.eq.s32.totalorder %s19, 1
      %p105 = por %p103, %p104
      %p106 = scmp.ne.s32.totalorder %s97, %s98
      %p107 = scmp.eq.s32.totalorder %s19, 0
      %p108 = por %p106, %p107
      %p109 = scmp.ne.s32.totalorder %s97, %s98
      %p110 = scmp.eq.s32.totalorder %s20, 1
      %p111 = por %p109, %p110
      %p113 = scmp.ne.s32.totalorder %s98, %s112
      %p114 = scmp.eq.s32.totalorder %s20, 0
      %p115 = por %p113, %p114
      %s116 = ssub.s32 %s14, %s21
      %p117 = scmp.eq.s32.totalorder %s116, 0
      %s119 = sadd.s32 %s118, 1
      %s120 = scalar_select %p117, %s118, %s119
      %p123 = pneg %p117
      %p124 = scmp.eq.s32.totalorder %s14, 1
      %p125 = por %p123, %p124
      %p126 = scmp.ne.s32.totalorder %s118, %s121
      %p127 = scmp.eq.s32.totalorder %s14, 0
      %p128 = por %p126, %p127
      %p129 = scmp.ne.s32.totalorder %s118, %s121
      %p130 = scmp.eq.s32.totalorder %s19, 1
      %p131 = por %p129, %p130
      %p132 = scmp.ne.s32.totalorder %s121, %s122
      %p133 = scmp.eq.s32.totalorder %s19, 0
      %p134 = por %p132, %p133
      %p135 = scmp.ne.s32.totalorder %s121, %s122
      %p136 = scmp.eq.s32.totalorder %s20, 1
      %p137 = por %p135, %p136
      %p139 = scmp.ne.s32.totalorder %s122, %s138
      %p140 = scmp.eq.s32.totalorder %s20, 0
      %p141 = por %p139, %p140
      %p142 = scmp.le.s32.totalorder 1, %s14
      %p143 = scmp.lt.s32.totalorder %s14, 3
      %p144 = pnand %p142, %p143
      %p145 = pneg %p144
      // Predicated region
      $region9: #{tpu_custom_call.1} parent=5 // pred_check
        _
      $region10: #{tpu_custom_call.1} parent=5 // pred_check_branch
        %147 = sbr.rel (%p144) target = $region12
      $region11: #{tpu_custom_call.1} parent=5 // pred_region
        %s148 = ssub.s32 %s14, 1
        // Predicated region
        $region13: #{tpu_custom_call.1} parent=11 // pred_check
          %p149 = pneg %p87
        $region14: #{tpu_custom_call.1} parent=11 // pred_check_branch
          %151 = sbr.rel (%p149) target = $region16
        $region15: #{tpu_custom_call.1} parent=11 // pred_region
          _
        $region16: #{tpu_custom_call.1} parent=11 // pred_fallthru
          _
        // Predicated region
        $region17: #{tpu_custom_call.1} parent=11 // pred_check
          %p152 = pneg %p108
        $region18: #{tpu_custom_call.1} parent=11 // pred_check_branch
          %154 = sbr.rel (%p152) target = $region20
        $region19: #{tpu_custom_call.1} parent=11 // pred_region
          _
        $region20: #{tpu_custom_call.1} parent=11 // pred_fallthru
          _
      $region12: #{tpu_custom_call.1} parent=5 // pred_fallthru
        _
      %p155 = scmp.lt.s32.totalorder %s14, 2
      // Predicated region
      $region21: #{tpu_custom_call.1} parent=5 // pred_check
        %p156 = pneg %p155
      $region22: #{tpu_custom_call.1} parent=5 // pred_check_branch
        %158 = sbr.rel (%p156) target = $region24
      $region23: #{tpu_custom_call.1} parent=5 // pred_region
        // Predicated region
        $region25: #{tpu_custom_call.1} parent=23 // pred_check
          %p159 = pneg %p34
        $region26: #{tpu_custom_call.1} parent=23 // pred_check_branch
          %161 = sbr.rel (%p159) target = $region28
        $region27: #{tpu_custom_call.1} parent=23 // pred_region
          %s162 = smul.u32 8, %s14
          %p163 = scmp.lt.s32.totalorder %s162, 15
          %s164 = scalar_select %p163, %s162, 15
          %s165 = smul.addr %s164, 8
          %s166 = smul.addr %s165, 8
          %s167 = scalar_lea.vmem %s0, %s166
          %s168 = smul.u32 8, %s14
        $region28: #{tpu_custom_call.1} parent=23 // pred_fallthru
          _
        // Predicated region
        $region29: #{tpu_custom_call.1} parent=23 // pred_check
          %p169 = pneg %p60
        $region30: #{tpu_custom_call.1} parent=23 // pred_check_branch
          %171 = sbr.rel (%p169) target = $region32
        $region31: #{tpu_custom_call.1} parent=23 // pred_region
          %p172 = scmp.lt.s32.totalorder %s14, 1
          %s173 = scalar_select %p172, %s14, 1
          %s174 = smul.addr %s173, 8
          %s175 = scalar_lea.vmem %s1, %s174
        $region32: #{tpu_custom_call.1} parent=23 // pred_fallthru
          _
      $region24: #{tpu_custom_call.1} parent=5 // pred_fallthru
        _
      %p176 = scmp.le.s32.totalorder 1, %s14
      %p177 = scmp.lt.s32.totalorder %s14, 3
      %p178 = pnand %p176, %p177
      %p179 = pneg %p178
      // Predicated region
      $region33: #{tpu_custom_call.1} parent=5 // pred_check
        _
      $region34: #{tpu_custom_call.1} parent=5 // pred_check_branch
        %181 = sbr.rel (%p178) target = $region36
      $region35: #{tpu_custom_call.1} parent=5 // pred_region
        %s182 = ssub.s32 %s14, 1
        %s183 = smul.u32 8, %s19
        %p184 = scmp.lt.s32.totalorder %s183, 15
        %s185 = scalar_select %p184, %s183, 15
        %s186 = smul.addr %s185, 8
        %s187 = smul.addr %s186, 8
        %s188 = scalar_lea.vmem %s0, %s187
        %p189 = pneg %p40
        %p190 = pneg %p37
        %p191 = scmp.lt.s32.totalorder %s19, 1
        %s192 = scalar_select %p191, %s19, 1
        %s193 = smul.addr %s192, 8
        %s194 = scalar_lea.vmem %s1, %s193
        %p195 = pneg %p66
        %p196 = pneg %p63
        %p197 = pneg %p87
        %p198 = pneg %p84
        %p199 = pneg %p108
        %p200 = pneg %p105
        %p201 = pneg %p134
        %p202 = pneg %p131
        %s203 = sand.u32 %s121, 1
        %s204 = scalar_lea.sflag [#allocation4], %s203
        %s205 = sand.u32 %s121, 1
        %s206 = smul.addr %s205, 8
        %s207 = scalar_lea.vmem [#allocation3], %s206
        %s208 = smul.u32 8, %s19
        %p209 = scmp.lt.s32.totalorder %s208, 15
        %s210 = scalar_select %p209, %s208, 15
        %s211 = smul.addr %s210, 8
        %s212 = smul.addr %s211, 8
        %s213 = scalar_lea.vmem %s0, %s212
        %s214 = smul.u32 8, %s19
        %p215 = scmp.lt.s32.totalorder %s19, 1
        %s216 = scalar_select %p215, %s19, 1
        %s217 = smul.addr %s216, 8
        %s218 = scalar_lea.vmem %s1, %s217
        %v219 = vld [vmem:[%s213] sm:$0xff]
        %v220 = vld [vmem:[%s213 + $0x8] sm:$0xff]
        %v221 = vld [vmem:[%s213 + $0x10] sm:$0xff]
        %v222 = vld [vmem:[%s213 + $0x18] sm:$0xff]
        %v223 = vld [vmem:[%s213 + $0x20] sm:$0xff]
        %v224 = vld [vmem:[%s213 + $0x28] sm:$0xff]
        %v225 = vld [vmem:[%s213 + $0x30] sm:$0xff]
        %v226 = vld [vmem:[%s213 + $0x38] sm:$0xff]
        %v227 = vld [vmem:[%s213 + $0x40] sm:$0xff]
        %v228 = vld [vmem:[%s213 + $0x48] sm:$0xff]
        %v229 = vld [vmem:[%s213 + $0x50] sm:$0xff]
        %v230 = vld [vmem:[%s213 + $0x58] sm:$0xff]
        %v231 = vld [vmem:[%s213 + $0x60] sm:$0xff]
        %v232 = vld [vmem:[%s213 + $0x68] sm:$0xff]
        %v233 = vld [vmem:[%s213 + $0x70] sm:$0xff]
        %v234 = vld [vmem:[%s213 + $0x78] sm:$0xff]
        %v235 = vld [vmem:[%s213 + $0x80] sm:$0xff]
        %v236 = vld [vmem:[%s213 + $0x88] sm:$0xff]
        %v237 = vld [vmem:[%s213 + $0x90] sm:$0xff]
        %v238 = vld [vmem:[%s213 + $0x98] sm:$0xff]
        %v239 = vld [vmem:[%s213 + $0xa0] sm:$0xff]
        %v240 = vld [vmem:[%s213 + $0xa8] sm:$0xff]
        %v241 = vld [vmem:[%s213 + $0xb0] sm:$0xff]
        %v242 = vld [vmem:[%s213 + $0xb8] sm:$0xff]
        %v243 = vld [vmem:[%s213 + $0xc0] sm:$0xff]
        %v244 = vld [vmem:[%s213 + $0xc8] sm:$0xff]
        %v245 = vld [vmem:[%s213 + $0xd0] sm:$0xff]
        %v246 = vld [vmem:[%s213 + $0xd8] sm:$0xff]
        %v247 = vld [vmem:[%s213 + $0xe0] sm:$0xff]
        %v248 = vld [vmem:[%s213 + $0xe8] sm:$0xff]
        %v249 = vld [vmem:[%s213 + $0xf0] sm:$0xff]
        %v250 = vld [vmem:[%s213 + $0xf8] sm:$0xff]
        %v251 = vld [vmem:[%s213 + $0x100] sm:$0xff]
        %v252 = vld [vmem:[%s213 + $0x108] sm:$0xff]
        %v253 = vld [vmem:[%s213 + $0x110] sm:$0xff]
        %v254 = vld [vmem:[%s213 + $0x118] sm:$0xff]
        %v255 = vld [vmem:[%s213 + $0x120] sm:$0xff]
        %v256 = vld [vmem:[%s213 + $0x128] sm:$0xff]
        %v257 = vld [vmem:[%s213 + $0x130] sm:$0xff]
        %v258 = vld [vmem:[%s213 + $0x138] sm:$0xff]
        %v259 = vld [vmem:[%s213 + $0x140] sm:$0xff]
        %v260 = vld [vmem:[%s213 + $0x148] sm:$0xff]
        %v261 = vld [vmem:[%s213 + $0x150] sm:$0xff]
        %v262 = vld [vmem:[%s213 + $0x158] sm:$0xff]
        %v263 = vld [vmem:[%s213 + $0x160] sm:$0xff]
        %v264 = vld [vmem:[%s213 + $0x168] sm:$0xff]
        %v265 = vld [vmem:[%s213 + $0x170] sm:$0xff]
        %v266 = vld [vmem:[%s213 + $0x178] sm:$0xff]
        %v267 = vld [vmem:[%s213 + $0x180] sm:$0xff]
        %v268 = vld [vmem:[%s213 + $0x188] sm:$0xff]
        %v269 = vld [vmem:[%s213 + $0x190] sm:$0xff]
        %v270 = vld [vmem:[%s213 + $0x198] sm:$0xff]
        %v271 = vld [vmem:[%s213 + $0x1a0] sm:$0xff]
        %v272 = vld [vmem:[%s213 + $0x1a8] sm:$0xff]
        %v273 = vld [vmem:[%s213 + $0x1b0] sm:$0xff]
        %v274 = vld [vmem:[%s213 + $0x1b8] sm:$0xff]
        %v275 = vld [vmem:[%s213 + $0x1c0] sm:$0xff]
        %v276 = vld [vmem:[%s213 + $0x1c8] sm:$0xff]
        %v277 = vld [vmem:[%s213 + $0x1d0] sm:$0xff]
        %v278 = vld [vmem:[%s213 + $0x1d8] sm:$0xff]
        %v279 = vld [vmem:[%s213 + $0x1e0] sm:$0xff]
        %v280 = vld [vmem:[%s213 + $0x1e8] sm:$0xff]
        %v281 = vld [vmem:[%s213 + $0x1f0] sm:$0xff]
        %v282 = vld [vmem:[%s213 + $0x1f8] sm:$0xff]
        %v283 = vld [vmem:[%s2] sm:$0x1]
        %s284 = sld [smem:[#allocation2]]
        %v286 = vlaneseq
        %v287 = vshrl.u32 %v286, 7
        %v288 = vsub.s32 0, %v287
        %v289 = vrot.slane %v283, %v288
        %v291 = vmul.f32 %v219, %v289
        %v292 = vmul.f32 %v220, %v289
        %v293 = vmul.f32 %v221, %v289
        %v294 = vmul.f32 %v222, %v289
        %v295 = vmul.f32 %v223, %v289
        %v296 = vmul.f32 %v224, %v289
        %v297 = vmul.f32 %v225, %v289
        %v298 = vmul.f32 %v226, %v289
        %v299 = vmul.f32 %v227, %v289
        %v300 = vmul.f32 %v228, %v289
        %v301 = vmul.f32 %v229, %v289
        %v302 = vmul.f32 %v230, %v289
        %v303 = vmul.f32 %v231, %v289
        %v304 = vmul.f32 %v232, %v289
        %v305 = vmul.f32 %v233, %v289
        %v306 = vmul.f32 %v234, %v289
        %v307 = vmul.f32 %v235, %v289
        %v308 = vmul.f32 %v236, %v289
        %v309 = vmul.f32 %v237, %v289
        %v310 = vmul.f32 %v238, %v289
        %v311 = vmul.f32 %v239, %v289
        %v312 = vmul.f32 %v240, %v289
        %v313 = vmul.f32 %v241, %v289
        %v314 = vmul.f32 %v242, %v289
        %v315 = vmul.f32 %v243, %v289
        %v316 = vmul.f32 %v244, %v289
        %v317 = vmul.f32 %v245, %v289
        %v318 = vmul.f32 %v246, %v289
        %v319 = vmul.f32 %v247, %v289
        %v320 = vmul.f32 %v248, %v289
        %v321 = vmul.f32 %v249, %v289
        %v322 = vmul.f32 %v250, %v289
        %v323 = vmul.f32 %v251, %v289
        %v324 = vmul.f32 %v252, %v289
        %v325 = vmul.f32 %v253, %v289
        %v326 = vmul.f32 %v254, %v289
        %v327 = vmul.f32 %v255, %v289
        %v328 = vmul.f32 %v256, %v289
        %v329 = vmul.f32 %v257, %v289
        %v330 = vmul.f32 %v258, %v289
        %v331 = vmul.f32 %v259, %v289
        %v332 = vmul.f32 %v260, %v289
        %v333 = vmul.f32 %v261, %v289
        %v334 = vmul.f32 %v262, %v289
        %v335 = vmul.f32 %v263, %v289
        %v336 = vmul.f32 %v264, %v289
        %v337 = vmul.f32 %v265, %v289
        %v338 = vmul.f32 %v266, %v289
        %v339 = vmul.f32 %v267, %v289
        %v340 = vmul.f32 %v268, %v289
        %v341 = vmul.f32 %v269, %v289
        %v342 = vmul.f32 %v270, %v289
        %v343 = vmul.f32 %v271, %v289
        %v344 = vmul.f32 %v272, %v289
        %v345 = vmul.f32 %v273, %v289
        %v346 = vmul.f32 %v274, %v289
        %v347 = vmul.f32 %v275, %v289
        %v348 = vmul.f32 %v276, %v289
        %v349 = vmul.f32 %v277, %v289
        %v350 = vmul.f32 %v278, %v289
        %v351 = vmul.f32 %v279, %v289
        %v352 = vmul.f32 %v280, %v289
        %v353 = vmul.f32 %v281, %v289
        %v354 = vmul.f32 %v282, %v289
        %vm355 = vcmask 261120
        %v356 = vsel %vm355, %v291, 0.0
        %357 = vadd.xlane.f32.xlu0 %v356
        %v358 = vpop.xlane.xlu0 %357
        %v359 = vsel %vm355, %v292, 0.0
        %360 = vadd.xlane.f32.xlu0 %v359
        %v361 = vpop.xlane.xlu0 %360
        %v362 = vsel %vm355, %v293, 0.0
        %363 = vadd.xlane.f32.xlu0 %v362
        %v364 = vpop.xlane.xlu0 %363
        %v365 = vsel %vm355, %v294, 0.0
        %366 = vadd.xlane.f32.xlu0 %v365
        %v367 = vpop.xlane.xlu0 %366
        %v368 = vsel %vm355, %v295, 0.0
        %369 = vadd.xlane.f32.xlu0 %v368
        %v370 = vpop.xlane.xlu0 %369
        %v371 = vsel %vm355, %v296, 0.0
        %372 = vadd.xlane.f32.xlu0 %v371
        %v373 = vpop.xlane.xlu0 %372
        %v374 = vsel %vm355, %v297, 0.0
        %375 = vadd.xlane.f32.xlu0 %v374
        %v376 = vpop.xlane.xlu0 %375
        %v377 = vsel %vm355, %v298, 0.0
        %378 = vadd.xlane.f32.xlu0 %v377
        %v379 = vpop.xlane.xlu0 %378
        %v380 = vsel %vm355, %v299, 0.0
        %381 = vadd.xlane.f32.xlu0 %v380
        %v382 = vpop.xlane.xlu0 %381
        %v383 = vsel %vm355, %v300, 0.0
        %384 = vadd.xlane.f32.xlu0 %v383
        %v385 = vpop.xlane.xlu0 %384
        %v386 = vsel %vm355, %v301, 0.0
        %387 = vadd.xlane.f32.xlu0 %v386
        %v388 = vpop.xlane.xlu0 %387
        %v389 = vsel %vm355, %v302, 0.0
        %390 = vadd.xlane.f32.xlu0 %v389
        %v391 = vpop.xlane.xlu0 %390
        %v392 = vsel %vm355, %v303, 0.0
        %393 = vadd.xlane.f32.xlu0 %v392
        %v394 = vpop.xlane.xlu0 %393
        %v395 = vsel %vm355, %v304, 0.0
        %396 = vadd.xlane.f32.xlu0 %v395
        %v397 = vpop.xlane.xlu0 %396
        %v398 = vsel %vm355, %v305, 0.0
        %399 = vadd.xlane.f32.xlu0 %v398
        %v400 = vpop.xlane.xlu0 %399
        %v401 = vsel %vm355, %v306, 0.0
        %402 = vadd.xlane.f32.xlu0 %v401
        %v403 = vpop.xlane.xlu0 %402
        %v404 = vsel %vm355, %v307, 0.0
        %405 = vadd.xlane.f32.xlu0 %v404
        %v406 = vpop.xlane.xlu0 %405
        %v407 = vsel %vm355, %v308, 0.0
        %408 = vadd.xlane.f32.xlu0 %v407
        %v409 = vpop.xlane.xlu0 %408
        %v410 = vsel %vm355, %v309, 0.0
        %411 = vadd.xlane.f32.xlu0 %v410
        %v412 = vpop.xlane.xlu0 %411
        %v413 = vsel %vm355, %v310, 0.0
        %414 = vadd.xlane.f32.xlu0 %v413
        %v415 = vpop.xlane.xlu0 %414
        %v416 = vsel %vm355, %v311, 0.0
        %417 = vadd.xlane.f32.xlu0 %v416
        %v418 = vpop.xlane.xlu0 %417
        %v419 = vsel %vm355, %v312, 0.0
        %420 = vadd.xlane.f32.xlu0 %v419
        %v421 = vpop.xlane.xlu0 %420
        %v422 = vsel %vm355, %v313, 0.0
        %423 = vadd.xlane.f32.xlu0 %v422
        %v424 = vpop.xlane.xlu0 %423
        %v425 = vsel %vm355, %v314, 0.0
        %426 = vadd.xlane.f32.xlu0 %v425
        %v427 = vpop.xlane.xlu0 %426
        %v428 = vsel %vm355, %v315, 0.0
        %429 = vadd.xlane.f32.xlu0 %v428
        %v430 = vpop.xlane.xlu0 %429
        %v431 = vsel %vm355, %v316, 0.0
        %432 = vadd.xlane.f32.xlu0 %v431
        %v433 = vpop.xlane.xlu0 %432
        %v434 = vsel %vm355, %v317, 0.0
        %435 = vadd.xlane.f32.xlu0 %v434
        %v436 = vpop.xlane.xlu0 %435
        %v437 = vsel %vm355, %v318, 0.0
        %438 = vadd.xlane.f32.xlu0 %v437
        %v439 = vpop.xlane.xlu0 %438
        %v440 = vsel %vm355, %v319, 0.0
        %441 = vadd.xlane.f32.xlu0 %v440
        %v442 = vpop.xlane.xlu0 %441
        %v443 = vsel %vm355, %v320, 0.0
        %444 = vadd.xlane.f32.xlu0 %v443
        %v445 = vpop.xlane.xlu0 %444
        %v446 = vsel %vm355, %v321, 0.0
        %447 = vadd.xlane.f32.xlu0 %v446
        %v448 = vpop.xlane.xlu0 %447
        %v449 = vsel %vm355, %v322, 0.0
        %450 = vadd.xlane.f32.xlu0 %v449
        %v451 = vpop.xlane.xlu0 %450
        %v452 = vsel %vm355, %v323, 0.0
        %453 = vadd.xlane.f32.xlu0 %v452
        %v454 = vpop.xlane.xlu0 %453
        %v455 = vsel %vm355, %v324, 0.0
        %456 = vadd.xlane.f32.xlu0 %v455
        %v457 = vpop.xlane.xlu0 %456
        %v458 = vsel %vm355, %v325, 0.0
        %459 = vadd.xlane.f32.xlu0 %v458
        %v460 = vpop.xlane.xlu0 %459
        %v461 = vsel %vm355, %v326, 0.0
        %462 = vadd.xlane.f32.xlu0 %v461
        %v463 = vpop.xlane.xlu0 %462
        %v464 = vsel %vm355, %v327, 0.0
        %465 = vadd.xlane.f32.xlu0 %v464
        %v466 = vpop.xlane.xlu0 %465
        %v467 = vsel %vm355, %v328, 0.0
        %468 = vadd.xlane.f32.xlu0 %v467
        %v469 = vpop.xlane.xlu0 %468
        %v470 = vsel %vm355, %v329, 0.0
        %471 = vadd.xlane.f32.xlu0 %v470
        %v472 = vpop.xlane.xlu0 %471
        %v473 = vsel %vm355, %v330, 0.0
        %474 = vadd.xlane.f32.xlu0 %v473
        %v475 = vpop.xlane.xlu0 %474
        %v476 = vsel %vm355, %v331, 0.0
        %477 = vadd.xlane.f32.xlu0 %v476
        %v478 = vpop.xlane.xlu0 %477
        %v479 = vsel %vm355, %v332, 0.0
        %480 = vadd.xlane.f32.xlu0 %v479
        %v481 = vpop.xlane.xlu0 %480
        %v482 = vsel %vm355, %v333, 0.0
        %483 = vadd.xlane.f32.xlu0 %v482
        %v484 = vpop.xlane.xlu0 %483
        %v485 = vsel %vm355, %v334, 0.0
        %486 = vadd.xlane.f32.xlu0 %v485
        %v487 = vpop.xlane.xlu0 %486
        %v488 = vsel %vm355, %v335, 0.0
        %489 = vadd.xlane.f32.xlu0 %v488
        %v490 = vpop.xlane.xlu0 %489
        %v491 = vsel %vm355, %v336, 0.0
        %492 = vadd.xlane.f32.xlu0 %v491
        %v493 = vpop.xlane.xlu0 %492
        %v494 = vsel %vm355, %v337, 0.0
        %495 = vadd.xlane.f32.xlu0 %v494
        %v496 = vpop.xlane.xlu0 %495
        %v497 = vsel %vm355, %v338, 0.0
        %498 = vadd.xlane.f32.xlu0 %v497
        %v499 = vpop.xlane.xlu0 %498
        %v500 = vsel %vm355, %v339, 0.0
        %501 = vadd.xlane.f32.xlu0 %v500
        %v502 = vpop.xlane.xlu0 %501
        %v503 = vsel %vm355, %v340, 0.0
        %504 = vadd.xlane.f32.xlu0 %v503
        %v505 = vpop.xlane.xlu0 %504
        %v506 = vsel %vm355, %v341, 0.0
        %507 = vadd.xlane.f32.xlu0 %v506
        %v508 = vpop.xlane.xlu0 %507
        %v509 = vsel %vm355, %v342, 0.0
        %510 = vadd.xlane.f32.xlu0 %v509
        %v511 = vpop.xlane.xlu0 %510
        %v512 = vsel %vm355, %v343, 0.0
        %513 = vadd.xlane.f32.xlu0 %v512
        %v514 = vpop.xlane.xlu0 %513
        %v515 = vsel %vm355, %v344, 0.0
        %516 = vadd.xlane.f32.xlu0 %v515
        %v517 = vpop.xlane.xlu0 %516
        %v518 = vsel %vm355, %v345, 0.0
        %519 = vadd.xlane.f32.xlu0 %v518
        %v520 = vpop.xlane.xlu0 %519
        %v521 = vsel %vm355, %v346, 0.0
        %522 = vadd.xlane.f32.xlu0 %v521
        %v523 = vpop.xlane.xlu0 %522
        %v524 = vsel %vm355, %v347, 0.0
        %525 = vadd.xlane.f32.xlu0 %v524
        %v526 = vpop.xlane.xlu0 %525
        %v527 = vsel %vm355, %v348, 0.0
        %528 = vadd.xlane.f32.xlu0 %v527
        %v529 = vpop.xlane.xlu0 %528
        %v530 = vsel %vm355, %v349, 0.0
        %531 = vadd.xlane.f32.xlu0 %v530
        %v532 = vpop.xlane.xlu0 %531
        %v533 = vsel %vm355, %v350, 0.0
        %534 = vadd.xlane.f32.xlu0 %v533
        %v535 = vpop.xlane.xlu0 %534
        %v536 = vsel %vm355, %v351, 0.0
        %537 = vadd.xlane.f32.xlu0 %v536
        %v538 = vpop.xlane.xlu0 %537
        %v539 = vsel %vm355, %v352, 0.0
        %540 = vadd.xlane.f32.xlu0 %v539
        %v541 = vpop.xlane.xlu0 %540
        %v542 = vsel %vm355, %v353, 0.0
        %543 = vadd.xlane.f32.xlu0 %v542
        %v544 = vpop.xlane.xlu0 %543
        %v545 = vsel %vm355, %v354, 0.0
        %546 = vadd.xlane.f32.xlu0 %v545
        %v547 = vpop.xlane.xlu0 %546
        %v548 = vstv %s284
        %v549 = vadd.f32 %v358, %v548
        %v550 = vadd.f32 %v361, %v548
        %v551 = vadd.f32 %v364, %v548
        %v552 = vadd.f32 %v367, %v548
        %v553 = vadd.f32 %v370, %v548
        %v554 = vadd.f32 %v373, %v548
        %v555 = vadd.f32 %v376, %v548
        %v556 = vadd.f32 %v379, %v548
        %v557 = vadd.f32 %v382, %v548
        %v558 = vadd.f32 %v385, %v548
        %v559 = vadd.f32 %v388, %v548
        %v560 = vadd.f32 %v391, %v548
        %v561 = vadd.f32 %v394, %v548
        %v562 = vadd.f32 %v397, %v548
        %v563 = vadd.f32 %v400, %v548
        %v564 = vadd.f32 %v403, %v548
        %v565 = vadd.f32 %v406, %v548
        %v566 = vadd.f32 %v409, %v548
        %v567 = vadd.f32 %v412, %v548
        %v568 = vadd.f32 %v415, %v548
        %v569 = vadd.f32 %v418, %v548
        %v570 = vadd.f32 %v421, %v548
        %v571 = vadd.f32 %v424, %v548
        %v572 = vadd.f32 %v427, %v548
        %v573 = vadd.f32 %v430, %v548
        %v574 = vadd.f32 %v433, %v548
        %v575 = vadd.f32 %v436, %v548
        %v576 = vadd.f32 %v439, %v548
        %v577 = vadd.f32 %v442, %v548
        %v578 = vadd.f32 %v445, %v548
        %v579 = vadd.f32 %v448, %v548
        %v580 = vadd.f32 %v451, %v548
        %v581 = vadd.f32 %v454, %v548
        %v582 = vadd.f32 %v457, %v548
        %v583 = vadd.f32 %v460, %v548
        %v584 = vadd.f32 %v463, %v548
        %v585 = vadd.f32 %v466, %v548
        %v586 = vadd.f32 %v469, %v548
        %v587 = vadd.f32 %v472, %v548
        %v588 = vadd.f32 %v475, %v548
        %v589 = vadd.f32 %v478, %v548
        %v590 = vadd.f32 %v481, %v548
        %v591 = vadd.f32 %v484, %v548
        %v592 = vadd.f32 %v487, %v548
        %v593 = vadd.f32 %v490, %v548
        %v594 = vadd.f32 %v493, %v548
        %v595 = vadd.f32 %v496, %v548
        %v596 = vadd.f32 %v499, %v548
        %v597 = vadd.f32 %v502, %v548
        %v598 = vadd.f32 %v505, %v548
        %v599 = vadd.f32 %v508, %v548
        %v600 = vadd.f32 %v511, %v548
        %v601 = vadd.f32 %v514, %v548
        %v602 = vadd.f32 %v517, %v548
        %v603 = vadd.f32 %v520, %v548
        %v604 = vadd.f32 %v523, %v548
        %v605 = vadd.f32 %v526, %v548
        %v606 = vadd.f32 %v529, %v548
        %v607 = vadd.f32 %v532, %v548
        %v608 = vadd.f32 %v535, %v548
        %v609 = vadd.f32 %v538, %v548
        %v610 = vadd.f32 %v541, %v548
        %v611 = vadd.f32 %v544, %v548
        %v612 = vadd.f32 %v547, %v548
        %v613 = vld [vmem:[%s218] sm:$0xff]
        %vm614 = vcmp.ne.s32.totalorder %v613, 0
        %v679 = vlaneseq
        %v680 = vand.u32 %v679, 127
        %v681 = vlaneseq
        %v682 = vshrl.u32 %v681, 7
        %v683 = vsub.s32 %v680, %v682
        %v684 = vrot.slane %v549, %v683
        %v685 = vadd.s32 %v680, 4294967288
        %v686 = vlaneseq
        %v687 = vshrl.u32 %v686, 7
        %v688 = vsub.s32 %v685, %v687
        %v689 = vrot.slane %v550, %v688
        %vm690 = vcmask 130112
        %v691 = vsel %vm690, %v689, %v684
        %v692 = vadd.s32 %v680, 4294967280
        %v693 = vlaneseq
        %v694 = vshrl.u32 %v693, 7
        %v695 = vsub.s32 %v692, %v694
        %v696 = vrot.slane %v551, %v695
        %vm697 = vcmask 195712
        %v698 = vsel %vm697, %v696, %v691
        %v699 = vadd.s32 %v680, 4294967272
        %v700 = vlaneseq
        %v701 = vshrl.u32 %v700, 7
        %v702 = vsub.s32 %v699, %v701
        %v703 = vrot.slane %v552, %v702
        %vm704 = vcmask 261312
        %v705 = vsel %vm704, %v703, %v698
        %v706 = vadd.s32 %v680, 4294967264
        %v707 = vlaneseq
        %v708 = vshrl.u32 %v707, 7
        %v709 = vsub.s32 %v706, %v708
        %v710 = vrot.slane %v553, %v709
        %vm711 = vcmask 326912
        %v712 = vsel %vm711, %v710, %v705
        %v713 = vadd.s32 %v680, 4294967256
        %v714 = vlaneseq
        %v715 = vshrl.u32 %v714, 7
        %v716 = vsub.s32 %v713, %v715
        %v717 = vrot.slane %v554, %v716
        %vm718 = vcmask 392512
        %v719 = vsel %vm718, %v717, %v712
        %v720 = vadd.s32 %v680, 4294967248
        %v721 = vlaneseq
        %v722 = vshrl.u32 %v721, 7
        %v723 = vsub.s32 %v720, %v722
        %v724 = vrot.slane %v555, %v723
        %vm725 = vcmask 458112
        %v726 = vsel %vm725, %v724, %v719
        %v727 = vadd.s32 %v680, 4294967240
        %v728 = vlaneseq
        %v729 = vshrl.u32 %v728, 7
        %v730 = vsub.s32 %v727, %v729
        %v731 = vrot.slane %v556, %v730
        %vm732 = vcmask 523712
        %v733 = vsel %vm732, %v731, %v726
        %v734 = vlaneseq
        %v735 = vshrl.u32 %v734, 7
        %v736 = vsub.s32 %v680, %v735
        %v737 = vrot.slane %v557, %v736
        %v738 = vlaneseq
        %v739 = vshrl.u32 %v738, 7
        %v740 = vsub.s32 %v685, %v739
        %v741 = vrot.slane %v558, %v740
        %v742 = vsel %vm690, %v741, %v737
        %v743 = vlaneseq
        %v744 = vshrl.u32 %v743, 7
        %v745 = vsub.s32 %v692, %v744
        %v746 = vrot.slane %v559, %v745
        %v747 = vsel %vm697, %v746, %v742
        %v748 = vlaneseq
        %v749 = vshrl.u32 %v748, 7
        %v750 = vsub.s32 %v699, %v749
        %v751 = vrot.slane %v560, %v750
        %v752 = vsel %vm704, %v751, %v747
        %v753 = vlaneseq
        %v754 = vshrl.u32 %v753, 7
        %v755 = vsub.s32 %v706, %v754
        %v756 = vrot.slane %v561, %v755
        %v757 = vsel %vm711, %v756, %v752
        %v758 = vlaneseq
        %v759 = vshrl.u32 %v758, 7
        %v760 = vsub.s32 %v713, %v759
        %v761 = vrot.slane %v562, %v760
        %v762 = vsel %vm718, %v761, %v757
        %v763 = vlaneseq
        %v764 = vshrl.u32 %v763, 7
        %v765 = vsub.s32 %v720, %v764
        %v766 = vrot.slane %v563, %v765
        %v767 = vsel %vm725, %v766, %v762
        %v768 = vlaneseq
        %v769 = vshrl.u32 %v768, 7
        %v770 = vsub.s32 %v727, %v769
        %v771 = vrot.slane %v564, %v770
        %v772 = vsel %vm732, %v771, %v767
        %v773 = vlaneseq
        %v774 = vshrl.u32 %v773, 7
        %v775 = vsub.s32 %v680, %v774
        %v776 = vrot.slane %v565, %v775
        %v777 = vlaneseq
        %v778 = vshrl.u32 %v777, 7
        %v779 = vsub.s32 %v685, %v778
        %v780 = vrot.slane %v566, %v779
        %v781 = vsel %vm690, %v780, %v776
        %v782 = vlaneseq
        %v783 = vshrl.u32 %v782, 7
        %v784 = vsub.s32 %v692, %v783
        %v785 = vrot.slane %v567, %v784
        %v786 = vsel %vm697, %v785, %v781
        %v787 = vlaneseq
        %v788 = vshrl.u32 %v787, 7
        %v789 = vsub.s32 %v699, %v788
        %v790 = vrot.slane %v568, %v789
        %v791 = vsel %vm704, %v790, %v786
        %v792 = vlaneseq
        %v793 = vshrl.u32 %v792, 7
        %v794 = vsub.s32 %v706, %v793
        %v795 = vrot.slane %v569, %v794
        %v796 = vsel %vm711, %v795, %v791
        %v797 = vlaneseq
        %v798 = vshrl.u32 %v797, 7
        %v799 = vsub.s32 %v713, %v798
        %v800 = vrot.slane %v570, %v799
        %v801 = vsel %vm718, %v800, %v796
        %v802 = vlaneseq
        %v803 = vshrl.u32 %v802, 7
        %v804 = vsub.s32 %v720, %v803
        %v805 = vrot.slane %v571, %v804
        %v806 = vsel %vm725, %v805, %v801
        %v807 = vlaneseq
        %v808 = vshrl.u32 %v807, 7
        %v809 = vsub.s32 %v727, %v808
        %v810 = vrot.slane %v572, %v809
        %v811 = vsel %vm732, %v810, %v806
        %v812 = vlaneseq
        %v813 = vshrl.u32 %v812, 7
        %v814 = vsub.s32 %v680, %v813
        %v815 = vrot.slane %v573, %v814
        %v816 = vlaneseq
        %v817 = vshrl.u32 %v816, 7
        %v818 = vsub.s32 %v685, %v817
        %v819 = vrot.slane %v574, %v818
        %v820 = vsel %vm690, %v819, %v815
        %v821 = vlaneseq
        %v822 = vshrl.u32 %v821, 7
        %v823 = vsub.s32 %v692, %v822
        %v824 = vrot.slane %v575, %v823
        %v825 = vsel %vm697, %v824, %v820
        %v826 = vlaneseq
        %v827 = vshrl.u32 %v826, 7
        %v828 = vsub.s32 %v699, %v827
        %v829 = vrot.slane %v576, %v828
        %v830 = vsel %vm704, %v829, %v825
        %v831 = vlaneseq
        %v832 = vshrl.u32 %v831, 7
        %v833 = vsub.s32 %v706, %v832
        %v834 = vrot.slane %v577, %v833
        %v835 = vsel %vm711, %v834, %v830
        %v836 = vlaneseq
        %v837 = vshrl.u32 %v836, 7
        %v838 = vsub.s32 %v713, %v837
        %v839 = vrot.slane %v578, %v838
        %v840 = vsel %vm718, %v839, %v835
        %v841 = vlaneseq
        %v842 = vshrl.u32 %v841, 7
        %v843 = vsub.s32 %v720, %v842
        %v844 = vrot.slane %v579, %v843
        %v845 = vsel %vm725, %v844, %v840
        %v846 = vlaneseq
        %v847 = vshrl.u32 %v846, 7
        %v848 = vsub.s32 %v727, %v847
        %v849 = vrot.slane %v580, %v848
        %v850 = vsel %vm732, %v849, %v845
        %v851 = vlaneseq
        %v852 = vshrl.u32 %v851, 7
        %v853 = vsub.s32 %v680, %v852
        %v854 = vrot.slane %v581, %v853
        %v855 = vlaneseq
        %v856 = vshrl.u32 %v855, 7
        %v857 = vsub.s32 %v685, %v856
        %v858 = vrot.slane %v582, %v857
        %v859 = vsel %vm690, %v858, %v854
        %v860 = vlaneseq
        %v861 = vshrl.u32 %v860, 7
        %v862 = vsub.s32 %v692, %v861
        %v863 = vrot.slane %v583, %v862
        %v864 = vsel %vm697, %v863, %v859
        %v865 = vlaneseq
        %v866 = vshrl.u32 %v865, 7
        %v867 = vsub.s32 %v699, %v866
        %v868 = vrot.slane %v584, %v867
        %v869 = vsel %vm704, %v868, %v864
        %v870 = vlaneseq
        %v871 = vshrl.u32 %v870, 7
        %v872 = vsub.s32 %v706, %v871
        %v873 = vrot.slane %v585, %v872
        %v874 = vsel %vm711, %v873, %v869
        %v875 = vlaneseq
        %v876 = vshrl.u32 %v875, 7
        %v877 = vsub.s32 %v713, %v876
        %v878 = vrot.slane %v586, %v877
        %v879 = vsel %vm718, %v878, %v874
        %v880 = vlaneseq
        %v881 = vshrl.u32 %v880, 7
        %v882 = vsub.s32 %v720, %v881
        %v883 = vrot.slane %v587, %v882
        %v884 = vsel %vm725, %v883, %v879
        %v885 = vlaneseq
        %v886 = vshrl.u32 %v885, 7
        %v887 = vsub.s32 %v727, %v886
        %v888 = vrot.slane %v588, %v887
        %v889 = vsel %vm732, %v888, %v884
        %v890 = vlaneseq
        %v891 = vshrl.u32 %v890, 7
        %v892 = vsub.s32 %v680, %v891
        %v893 = vrot.slane %v589, %v892
        %v894 = vlaneseq
        %v895 = vshrl.u32 %v894, 7
        %v896 = vsub.s32 %v685, %v895
        %v897 = vrot.slane %v590, %v896
        %v898 = vsel %vm690, %v897, %v893
        %v899 = vlaneseq
        %v900 = vshrl.u32 %v899, 7
        %v901 = vsub.s32 %v692, %v900
        %v902 = vrot.slane %v591, %v901
        %v903 = vsel %vm697, %v902, %v898
        %v904 = vlaneseq
        %v905 = vshrl.u32 %v904, 7
        %v906 = vsub.s32 %v699, %v905
        %v907 = vrot.slane %v592, %v906
        %v908 = vsel %vm704, %v907, %v903
        %v909 = vlaneseq
        %v910 = vshrl.u32 %v909, 7
        %v911 = vsub.s32 %v706, %v910
        %v912 = vrot.slane %v593, %v911
        %v913 = vsel %vm711, %v912, %v908
        %v914 = vlaneseq
        %v915 = vshrl.u32 %v914, 7
        %v916 = vsub.s32 %v713, %v915
        %v917 = vrot.slane %v594, %v916
        %v918 = vsel %vm718, %v917, %v913
        %v919 = vlaneseq
        %v920 = vshrl.u32 %v919, 7
        %v921 = vsub.s32 %v720, %v920
        %v922 = vrot.slane %v595, %v921
        %v923 = vsel %vm725, %v922, %v918
        %v924 = vlaneseq
        %v925 = vshrl.u32 %v924, 7
        %v926 = vsub.s32 %v727, %v925
        %v927 = vrot.slane %v596, %v926
        %v928 = vsel %vm732, %v927, %v923
        %v929 = vlaneseq
        %v930 = vshrl.u32 %v929, 7
        %v931 = vsub.s32 %v680, %v930
        %v932 = vrot.slane %v597, %v931
        %v933 = vlaneseq
        %v934 = vshrl.u32 %v933, 7
        %v935 = vsub.s32 %v685, %v934
        %v936 = vrot.slane %v598, %v935
        %v937 = vsel %vm690, %v936, %v932
        %v938 = vlaneseq
        %v939 = vshrl.u32 %v938, 7
        %v940 = vsub.s32 %v692, %v939
        %v941 = vrot.slane %v599, %v940
        %v942 = vsel %vm697, %v941, %v937
        %v943 = vlaneseq
        %v944 = vshrl.u32 %v943, 7
        %v945 = vsub.s32 %v699, %v944
        %v946 = vrot.slane %v600, %v945
        %v947 = vsel %vm704, %v946, %v942
        %v948 = vlaneseq
        %v949 = vshrl.u32 %v948, 7
        %v950 = vsub.s32 %v706, %v949
        %v951 = vrot.slane %v601, %v950
        %v952 = vsel %vm711, %v951, %v947
        %v953 = vlaneseq
        %v954 = vshrl.u32 %v953, 7
        %v955 = vsub.s32 %v713, %v954
        %v956 = vrot.slane %v602, %v955
        %v957 = vsel %vm718, %v956, %v952
        %v958 = vlaneseq
        %v959 = vshrl.u32 %v958, 7
        %v960 = vsub.s32 %v720, %v959
        %v961 = vrot.slane %v603, %v960
        %v962 = vsel %vm725, %v961, %v957
        %v963 = vlaneseq
        %v964 = vshrl.u32 %v963, 7
        %v965 = vsub.s32 %v727, %v964
        %v966 = vrot.slane %v604, %v965
        %v967 = vsel %vm732, %v966, %v962
        %v968 = vlaneseq
        %v969 = vshrl.u32 %v968, 7
        %v970 = vsub.s32 %v680, %v969
        %v971 = vrot.slane %v605, %v970
        %v972 = vlaneseq
        %v973 = vshrl.u32 %v972, 7
        %v974 = vsub.s32 %v685, %v973
        %v975 = vrot.slane %v606, %v974
        %v976 = vsel %vm690, %v975, %v971
        %v977 = vlaneseq
        %v978 = vshrl.u32 %v977, 7
        %v979 = vsub.s32 %v692, %v978
        %v980 = vrot.slane %v607, %v979
        %v981 = vsel %vm697, %v980, %v976
        %v982 = vlaneseq
        %v983 = vshrl.u32 %v982, 7
        %v984 = vsub.s32 %v699, %v983
        %v985 = vrot.slane %v608, %v984
        %v986 = vsel %vm704, %v985, %v981
        %v987 = vlaneseq
        %v988 = vshrl.u32 %v987, 7
        %v989 = vsub.s32 %v706, %v988
        %v990 = vrot.slane %v609, %v989
        %v991 = vsel %vm711, %v990, %v986
        %v992 = vlaneseq
        %v993 = vshrl.u32 %v992, 7
        %v994 = vsub.s32 %v713, %v993
        %v995 = vrot.slane %v610, %v994
        %v996 = vsel %vm718, %v995, %v991
        %v997 = vlaneseq
        %v998 = vshrl.u32 %v997, 7
        %v999 = vsub.s32 %v720, %v998
        %v1000 = vrot.slane %v611, %v999
        %v1001 = vsel %vm725, %v1000, %v996
        %v1002 = vlaneseq
        %v1003 = vshrl.u32 %v1002, 7
        %v1004 = vsub.s32 %v727, %v1003
        %v1005 = vrot.slane %v612, %v1004
        %v1006 = vsel %vm732, %v1005, %v1001
        %vm1007 = vcmask 1041409
        %v1008 = vsel %vm1007, %v772, %v733
        %vm1009 = vcmask 1042434
        %v1010 = vsel %vm1009, %v811, %v1008
        %vm1011 = vcmask 1043459
        %v1012 = vsel %vm1011, %v850, %v1010
        %vm1013 = vcmask 1044484
        %v1014 = vsel %vm1013, %v889, %v1012
        %vm1015 = vcmask 1045509
        %v1016 = vsel %vm1015, %v928, %v1014
        %vm1017 = vcmask 1046534
        %v1018 = vsel %vm1017, %v967, %v1016
        %vm1019 = vcmask 1047559
        %v1020 = vsel %vm1019, %v1006, %v1018
        %v1022 = vsel %vm614, -1e+30, %v1020
        %vm1023 = vcmask 523264
        %v1024 = vsel %vm1023, %v1022, -inf
        %1025 = vmax.xlane.f32.xlu0 %v1024
        %v1026 = vpop.xlane.xlu0 %1025
        %v1027 = vsub.f32 %v1022, %v1026
        %v1028 = vmul.f32 %v1027, 1.442695
        %v1029 = vpow.pop %v1028
        %v1030 = vsel %vm1023, %v1029, 0.0
        %1031 = vadd.xlane.f32.xlu0 %v1030
        %v1032 = vpop.xlane.xlu0 %1031
        %v1033 = vrcp.pop %v1032
        %v1034 = vmul.f32 %v1029, %v1033
        %1035 = vst.msk [vmem:[%s207] sm:$0xff] %vm1023, %v1034
        %s1036 = sand.u32 %s121, 1
        %s1037 = scalar_lea.sflag [#allocation4], %s1036
        %s1038 = sand.u32 %s121, 1
        %s1039 = smul.addr %s1038, 8
        %s1040 = scalar_lea.vmem [#allocation3], %s1039
        // Predicated region
        $region37: #{tpu_custom_call.1} parent=35 // pred_check
          %p1041 = pneg %p131
        $region38: #{tpu_custom_call.1} parent=35 // pred_check_branch
          %1043 = sbr.rel (%p1041) target = $region40
        $region39: #{tpu_custom_call.1} parent=35 // pred_region
          %s1045 = ssub.s32 128, 128
          %1046 = vsyncadd %s1037, %s1045
          %s1047 = smul.addr %s19, 128
          %s1048 = scalar_lea.hbm %s4, %s1047
          %s1050 = sshll.u32 %s1040, 4
          %s1051 = int_to_ptr.vmem [resolvable:$true] %s1050
          %1053 = dma.vmem_to_hbm [thread:$0]  %s1051, 128, %s1048, %s1037
        $region40: #{tpu_custom_call.1} parent=35 // pred_fallthru
          _
      $region36: #{tpu_custom_call.1} parent=5 // pred_fallthru
        _
      %p1054 = scmp.le.s32.totalorder 2, %s14
      // Predicated region
      $region41: #{tpu_custom_call.1} parent=5 // pred_check
        %p1055 = pneg %p1054
      $region42: #{tpu_custom_call.1} parent=5 // pred_check_branch
        %1057 = sbr.rel (%p1055) target = $region44
      $region43: #{tpu_custom_call.1} parent=5 // pred_region
        %s1058 = ssub.s32 %s14, 2
        // Predicated region
        $region45: #{tpu_custom_call.1} parent=43 // pred_check
          %p1059 = pneg %p137
        $region46: #{tpu_custom_call.1} parent=43 // pred_check_branch
          %1061 = sbr.rel (%p1059) target = $region48
        $region47: #{tpu_custom_call.1} parent=43 // pred_region
          %s1062 = sand.u32 %s122, 1
          %s1063 = scalar_lea.sflag [#allocation4], %s1062
          %s1064 = sand.u32 %s122, 1
          %s1065 = smul.addr %s1064, 8
          %s1066 = scalar_lea.vmem [#allocation3], %s1065
          %1067 = dma.done %s1063, 128
        $region48: #{tpu_custom_call.1} parent=43 // pred_fallthru
          _
      $region44: #{tpu_custom_call.1} parent=5 // pred_fallthru
        _
    $region6: #{tpu_custom_call.1} parent=1 // loop_footer
      %s18 = sadd.s32 1, %s14
    $region7: #{tpu_custom_call.1} parent=1 // loop_footer_branch
      %13 = sbr.rel target = $region3
    $region8: #{tpu_custom_call.1} parent=1 // loop_exit
      _
    %1068 = vsyncpa [#allocation4], 1
    %s1069 = scalar_lea.sflag [#allocation4], 1
    %1070 = vsyncpa %s1069, 1

</llo_original>
